<compile_context>
chip_gen: v7x
topology: tpu7x:2x2x1
jax: 0.10.0
libtpu: 0.0.40
codegen_flags: <defaults>
</compile_context>

<pallas_src>
import functools

import jax
import jax.numpy as jnp
from jax import lax
from jax.experimental import pallas as pl
from jax.experimental.pallas import tpu as pltpu


def _round_up(x, m):
    return ((x + m - 1) // m) * m


# ----------------------------------------------------------------------------------
# pltpu.roll lane-rotation direction is verified empirically once at startup so the
# in-kernel kw-shift sign stays correct across jax versions.
# ----------------------------------------------------------------------------------
def _roll_probe_kernel(x_ref, o_ref):
    o_ref[...] = pltpu.roll(x_ref[...], shift=1, axis=1)


def _roll_shifts_to_higher():
    """True if pltpu.roll(+s) moves elements toward higher lane indices (np.roll)."""
    x = jnp.tile(jnp.arange(128, dtype=jnp.float32)[None, :], (8, 1))
    out = pl.pallas_call(
        _roll_probe_kernel,
        out_shape=jax.ShapeDtypeStruct((8, 128), jnp.float32),
    )(x)
    return bool(out[0, 0] == 127.0)


# ----------------------------------------------------------------------------------
# Fused conv kernel: contraction over (kh, c_in) on the MXU, kw handled by lane rolls.
# ----------------------------------------------------------------------------------
def _fused_conv_kernel(p_ref, w_ref, b_ref, o_ref, *, roll_to_higher):
    # p_ref: (K*C_in, TH*Wl)   kh-expanded input rows, W zero-padded to Wl (128-mult)
    # w_ref: (K, C_out, K*C_in) weights, kw-major / (kh, c_in)-minor
    # b_ref: (C_out, 1)         bias
    # o_ref: (C_out, TH, Wo)    exact-shape output tile (masked store on lane tail)
    kk = w_ref.shape[0]
    c_out, th, wo = o_ref.shape
    size = p_ref.shape[1]
    wl = size // th

    p = p_ref[...]                                              # (KC, TH*Wl)
    acc = jnp.dot(w_ref[0], p, preferred_element_type=jnp.float32)
    for kw in range(1, kk):
        y = jnp.dot(w_ref[kw], p, preferred_element_type=jnp.float32)
        # logical jnp.roll(y, -kw, axis=1): out[f] = y[f + kw]; the wrapped lanes only
        # land at columns >= Wl - kw >= Wo, which are discarded by the exact-shape store.
        shift = (size - kw) if roll_to_higher else kw
        acc = acc + pltpu.roll(y, shift=shift, axis=1)
    acc = (acc + b_ref[...]).reshape(c_out, th, wl)             # free: wl % 128 == 0
    o_ref[...] = acc[:, :, :wo].astype(o_ref.dtype)


def conv_layer_forward(x, weight, bias, *, kernel_size, stride=1, roll_to_higher=True):
    """ConvLayer forward: ReflectionPad2d(K//2) + Conv2d(K, stride=1).

    x: (N, C_in, H, W); weight: (C_out, C_in, K, K) [OIHW]; bias: (C_out,).
    Returns (N, C_out, Ho, Wo) in NCHW.
    """
    if stride != 1:
        # TODO(synk): stride > 1 ConvLayers (not used inside ARB/AGFG) are not fused.
        raise NotImplementedError("fused ConvLayer kernel supports stride == 1 only")

    K = kernel_size
    pad = K // 2
    x_pad = (jnp.pad(x, ((0, 0), (0, 0), (pad, pad), (pad, pad)), mode="reflect")
             if pad > 0 else x)
    N, C_in, Hp, Wp = x_pad.shape
    C_out = weight.shape[0]
    Ho = Hp - K + 1
    Wo = Wp - K + 1
    KC = K * C_in

    # kh-expansion (K-fold, not K*K-fold) + lane-pad W to a 128 multiple.  XLA fuses
    # the reflect pad, the K row-shifted slices, the concat and the lane pad into one
    # producer of `patches`; the kw shifts happen in-kernel via pltpu.roll.
    Wl = _round_up(Wp, 128)
    if K > 1:
        slabs = [x_pad[:, :, kh:kh + Ho, :] for kh in range(K)]
        patches = jnp.concatenate(slabs, axis=1)                # (N, KC, Ho, Wp)
    else:
        patches = x_pad
    if Wl != Wp:
        patches = jnp.pad(patches, ((0, 0), (0, 0), (0, 0), (0, Wl - Wp)))
    patches = patches.reshape(N, KC, Ho * Wl)                   # free metadata reshape

    # Weights -> (kw, C_out, kh*C_in+ci); bias -> (C_out, 1).
    w_t = jnp.transpose(weight, (3, 0, 2, 1)).reshape(K, C_out, KC)
    b2 = bias.reshape(C_out, 1)

    # Row-tile size: ~4096 lanes per tile (mem-bound efficiency knee), multiple of 8
    # unless it covers all rows; when N == 1 keep >= 2 row tiles for v7x's 2 cores.
    th_target = max(8, (4096 // Wl) // 8 * 8)
    if N == 1:
        th_target = min(th_target, max(8, _round_up(pl.cdiv(Ho, 2), 8)))
    TH = Ho if th_target >= Ho else th_target
    n_h = pl.cdiv(Ho, TH)

    flops = 2 * N * n_h * K * C_out * KC * TH * Wl
    bytes_accessed = 4 * (patches.size + w_t.size + b2.size + N * C_out * Ho * Wo)

    kernel = functools.partial(_fused_conv_kernel, roll_to_higher=roll_to_higher)
    out = pl.pallas_call(
        kernel,
        out_shape=jax.ShapeDtypeStruct((N, C_out, Ho, Wo), x.dtype),
        grid=(N, n_h),
        in_specs=[
            pl.BlockSpec((None, KC, TH * Wl), lambda n, h: (n, 0, h)),
            pl.BlockSpec((K, C_out, KC), lambda n, h: (0, 0, 0)),
            pl.BlockSpec((C_out, 1), lambda n, h: (0, 0)),
        ],
        out_specs=pl.BlockSpec((None, C_out, TH, Wo), lambda n, h: (n, 0, h, 0)),
        compiler_params=pltpu.CompilerParams(
            dimension_semantics=("parallel", "parallel")),
        cost_estimate=pl.CostEstimate(
            flops=flops, transcendentals=0, bytes_accessed=bytes_accessed),
    )(patches, w_t, b2)
    return out


def _reference(x, weight, bias, *, kernel_size):
    pad = kernel_size // 2
    x_pad = (jnp.pad(x, ((0, 0), (0, 0), (pad, pad), (pad, pad)), mode="reflect")
             if pad > 0 else x)
    y = lax.conv_general_dilated(
        x_pad, weight, window_strides=(1, 1), padding="VALID",
        dimension_numbers=("NCHW", "OIHW", "NCHW"))
    return y + bias[None, :, None, None]


if __name__ == "__main__":
    roll_hi = _roll_shifts_to_higher()

    # ConvLayer(in_channels=4, out_channels=8, kernel_size=3, stride=1) on (2,4,16,16).
    N, C_in, H, W = 2, 4, 16, 16
    C_out, K = 8, 3
    key = jax.random.PRNGKey(0)
    kx, kw_, kb = jax.random.split(key, 3)
    x = jax.random.normal(kx, (N, C_in, H, W), dtype=jnp.float32)
    fan_in = C_in * K * K
    bound = 1.0 / (fan_in ** 0.5)
    weight = jax.random.uniform(kw_, (C_out, C_in, K, K), jnp.float32, -bound, bound)
    bias = jax.random.uniform(kb, (C_out,), jnp.float32, -bound, bound)

    fwd = jax.jit(functools.partial(conv_layer_forward, kernel_size=K,
                                    roll_to_higher=roll_hi))
    out = fwd(x, weight, bias)
    jax.block_until_ready(out)
    ref = _reference(x, weight, bias, kernel_size=K)
    assert out.shape == (N, C_out, H, W), out.shape
    err = float(jnp.max(jnp.abs(out - ref)))
    assert jnp.allclose(out, ref, atol=1e-4, rtol=1e-4), err

    # ARB's mean_conv3 + std_conv3 (two 16->1 1x1 ConvLayers) fused into ONE call with
    # stacked weights (C_out=2): halves the dominant 16-channel input reads (review item).
    C_in2, C_out2, K2 = 16, 2, 1
    k2x, k2w, k2b = jax.random.split(jax.random.PRNGKey(1), 3)
    x2 = jax.random.normal(k2x, (N, C_in2, H, W), dtype=jnp.float32)
    bound2 = 1.0 / (C_in2 ** 0.5)
    weight2 = jax.random.uniform(k2w, (C_out2, C_in2, K2, K2), jnp.float32,
                                 -bound2, bound2)
    bias2 = jax.random.uniform(k2b, (C_out2,), jnp.float32, -bound2, bound2)

    fwd2 = jax.jit(functools.partial(conv_layer_forward, kernel_size=K2,
                                     roll_to_higher=roll_hi))
    out2 = fwd2(x2, weight2, bias2)
    jax.block_until_ready(out2)
    ref2 = _reference(x2, weight2, bias2, kernel_size=K2)
    assert out2.shape == (N, C_out2, H, W), out2.shape
    err2 = float(jnp.max(jnp.abs(out2 - ref2)))
    assert jnp.allclose(out2, ref2, atol=1e-4, rtol=1e-4), err2

    print("KERNEL_OK")
</pallas_src>

<mosaic_0001>
module attributes {stable_mosaic.version = 11 : i64} {
  func.func @_roll_probe_kernel(%arg0: memref<8x128xf32, #tpu.memory_space<vmem>>, %arg1: memref<8x128xf32, #tpu.memory_space<vmem>>) attributes {dimension_semantics = [], scalar_prefetch = 0 : i64, scratch_operands = 0 : i64, tpu.core_type = #tpu.core_type<tc>} {
    %c0 = arith.constant 0 : index
    %c0_0 = arith.constant 0 : index
    %0 = vector.load %arg0[%c0, %c0_0] : memref<8x128xf32, #tpu.memory_space<vmem>>, vector<8x128xf32>
    %c1_i32 = arith.constant 1 : i32
    %1 = tpu.dynamic_rotate %0 by %c1_i32 dim 1 : vector<8x128xf32>, i32 -> vector<8x128xf32>
    %c0_1 = arith.constant 0 : index
    %c0_2 = arith.constant 0 : index
    %2 = vector.load %arg1[%c0_1, %c0_2] : memref<8x128xf32, #tpu.memory_space<vmem>>, vector<8x128xf32>
    tpu.vector_store %arg1[%c0_1, %c0_2], %1 {strides = array<i32>} : memref<8x128xf32, #tpu.memory_space<vmem>>, vector<8x128xf32>,
    return
  }
}

</mosaic_0001>

<llo_original>
// kernel: tpu_custom_call.1
$region0: #{tpu_custom_call.1}
  #allocation0 [shape = 'u32[]', space=smem, size = 0x4, offset = 0x4, fixed_abs, tag = 'smem constant byte address 0x4 - core index']
  #allocation1 [shape = 'u32[144,128]{1,0:T(1,128)}', space=vmem, size = 0x12000, scoped, tag = 'internal scratch']
  %s0 = inlined_call_operand.hbm [shape: f32[8,128], index: 0, kind: input, shape index: {}]
  %s1 = inlined_call_operand.hbm [shape: f32[8,128], index: 1, kind: output, shape index: {}]
  %s2 = sld [smem:[#allocation0]]
  $region18: #{tpu_custom_call.1} parent=0
    _
  %s4 = ssub.s32 1, %s2
  %s5 = scalar_select 0, %s4, %s2
  $region1: #{tpu_custom_call.1} parent=0
    #allocation2 [shape = 'u8[4096]{0}', space=vmem, size = 0x1000, scoped, tag = 'input window, operand 0, single buffered']
    #allocation3 [shape = 's32[1]{0}', space=sflag, size = 0x4, scoped, tag = 'scoped memory for tpu_custom_call.1']
    #allocation4 [shape = 's32[1]{0}', space=sflag, size = 0x4, scoped, tag = 'scoped memory for tpu_custom_call.1']
    #allocation5 [shape = 'u8[4096]{0}', space=vmem, size = 0x1000, scoped, tag = 'output window, operand 0, single buffered']
    %6 = vsyncpa [#allocation3], 0
    %7 = vsyncpa [#allocation4], 0
    // Predicated region
    $region2: #{tpu_custom_call.1} parent=1 // pred_check
      _
    $region3: #{tpu_custom_call.1} parent=1 // pred_check_branch
      %9 = sbr.rel (0) target = $region5
    $region4: #{tpu_custom_call.1} parent=1 // pred_region
      %s11 = ssub.s32 128, 128
      %12 = vsyncadd [#allocation3], %s11
      %s14 = sshll.u32 [#allocation2], 4
      %s15 = int_to_ptr.vmem [resolvable:$true] %s14
      %17 = dma.hbm_to_vmem [thread:$0]  %s0, 128, %s15, [#allocation3]
    $region5: #{tpu_custom_call.1} parent=1 // pred_fallthru
      _
    // Predicated region
    $region6: #{tpu_custom_call.1} parent=1 // pred_check
      _
    $region7: #{tpu_custom_call.1} parent=1 // pred_check_branch
      %19 = sbr.rel (0) target = $region9
    $region8: #{tpu_custom_call.1} parent=1 // pred_region
      %20 = dma.done [#allocation3], 128
    $region9: #{tpu_custom_call.1} parent=1 // pred_fallthru
      _
    %v21 = vld [vmem:[#allocation2] sm:$0xff]
    %22 = vrot.lane.b32.xlu0 %v21, 1
    %v23 = vpop.permute.xlu0 %22
    %24 = vst [vmem:[#allocation5] sm:$0xff] %v23
    // Predicated region
    $region10: #{tpu_custom_call.1} parent=1 // pred_check
      _
    $region11: #{tpu_custom_call.1} parent=1 // pred_check_branch
      %26 = sbr.rel (0) target = $region13
    $region12: #{tpu_custom_call.1} parent=1 // pred_region
      %s28 = ssub.s32 128, 128
      %29 = vsyncadd [#allocation4], %s28
      %s31 = sshll.u32 [#allocation5], 4
      %s32 = int_to_ptr.vmem [resolvable:$true] %s31
      %34 = dma.vmem_to_hbm [thread:$0]  %s32, 128, %s1, [#allocation4]
    $region13: #{tpu_custom_call.1} parent=1 // pred_fallthru
      _
    // Predicated region
    $region14: #{tpu_custom_call.1} parent=1 // pred_check
      _
    $region15: #{tpu_custom_call.1} parent=1 // pred_check_branch
      %36 = sbr.rel (0) target = $region17
    $region16: #{tpu_custom_call.1} parent=1 // pred_region
      %37 = dma.done [#allocation4], 128
    $region17: #{tpu_custom_call.1} parent=1 // pred_fallthru
      _
    %38 = vsyncpa [#allocation3], 1
    %39 = vsyncpa [#allocation4], 1

</llo_original>
